<compile_context>
chip_gen: v5e
topology: v5e:2x2
jax: 0.10.0
libtpu: 0.0.40
codegen_flags: <defaults>
</compile_context>

<pallas_src>
import functools

import jax
import jax.numpy as jnp
from jax import lax
from jax.experimental import pallas as pl
from jax.experimental.pallas import tpu as pltpu

DEFAULT_T_BLK = 512   # tokens per grid step (mem-bound roofline sweet spot)
DEFAULT_V_BLK = 512   # vocab chunk per inner grid step
ONEHOT_MAX_V_F32 = 1024     # one-hot matmul crossover (conservative, v5e-safe)
ONEHOT_MAX_V_16BIT = 2048


def _round_up(x, m):
    return (x + m - 1) // m * m


def _embed_kernel(labels_ref, emb_ref, out_ref, acc_ref, *, precision):
    # labels_ref: VMEM (t_blk, 1) int32 token ids for this token tile
    # emb_ref:    VMEM (v_blk, D) chunk of the embedding table
    # out_ref:    VMEM (t_blk, D) output tile (same block across the V axis)
    # acc_ref:    VMEM (t_blk, D) f32 accumulator scratch
    j = pl.program_id(1)
    v_blk = emb_ref.shape[0]
    t = out_ref.shape[0]

    @pl.when(j == 0)
    def _():
        acc_ref[...] = jnp.zeros_like(acc_ref)

    ids = labels_ref[...]                                       # (t, 1) int32
    col = lax.broadcasted_iota(jnp.int32, (t, v_blk), 1) + j * v_blk
    onehot = (col == ids).astype(emb_ref.dtype)                 # (t, v_blk)
    acc_ref[...] += jnp.dot(
        onehot, emb_ref[...],
        preferred_element_type=jnp.float32,
        precision=precision,
    )

    @pl.when(j == pl.num_programs(1) - 1)
    def _():
        out_ref[...] = acc_ref[...].astype(out_ref.dtype)


def text_ops_forward(labels, emb_weight, *, t_blk=DEFAULT_T_BLK,
                     v_blk=DEFAULT_V_BLK, force_pallas=False):
    """Equivalent of TextOps.forward: label_embed(labels)."""
    orig_shape = labels.shape
    V, D = emb_weight.shape
    flat = labels.reshape(-1).astype(jnp.int32)
    n = flat.shape[0]
    itemsize = jnp.dtype(emb_weight.dtype).itemsize

    max_v = ONEHOT_MAX_V_16BIT if itemsize <= 2 else ONEHOT_MAX_V_F32
    small_n = n < 2 * t_blk  # one/two grid steps -> launch overhead dominates
    if (small_n and not force_pallas) or V > max_v:
        # Small-N fast path and large-vocab fallback.
        # TODO(synk): replace the large-V branch with an HBM-resident DMA
        # row-gather Pallas kernel (scalar-prefetched labels + async copies).
        return jnp.take(emb_weight, labels, axis=0)

    # ---- token tiling (multiple of 32: packed-dtype safe) ----
    t_blk = min(t_blk, _round_up(n, 32))
    n_pad = _round_up(n, t_blk)
    if n_pad != n:
        flat = jnp.pad(flat, (0, n_pad - n))  # pad ids with 0 (a valid row)
    flat2d = flat.reshape(n_pad, 1)

    # ---- vocab tiling ----
    if V <= v_blk:
        v_blk_eff, v_pad, table = V, V, emb_weight
    else:
        v_blk_eff = v_blk
        v_pad = _round_up(V, v_blk)
        table = emb_weight
        if v_pad != V:
            table = jnp.pad(emb_weight, ((0, v_pad - V), (0, 0)))

    grid = (n_pad // t_blk, v_pad // v_blk_eff)

    # f32 tables: keep gathered rows bit-faithful on the MXU.
    precision = (lax.Precision.HIGHEST if emb_weight.dtype == jnp.float32
                 else lax.Precision.DEFAULT)

    cost = pl.CostEstimate(
        flops=2 * n_pad * v_pad * D,
        transcendentals=0,
        bytes_accessed=(grid[0] * v_pad * D * itemsize   # table re-read per token tile
                        + n_pad * 4                       # labels
                        + n_pad * D * itemsize),          # output writeback
    )

    need_vmem = (2 * v_blk_eff * D * itemsize   # table chunk, double-buffered
                 + 2 * t_blk * 4                # label blocks
                 + 2 * t_blk * D * itemsize     # output blocks
                 + t_blk * D * 4                # f32 accumulator scratch
                 + t_blk * v_blk_eff * 4)       # one-hot intermediate
    vmem_limit = int(min(max(2 * need_vmem + (4 << 20), 16 << 20), 48 << 20))

    out = pl.pallas_call(
        functools.partial(_embed_kernel, precision=precision),
        out_shape=jax.ShapeDtypeStruct((n_pad, D), emb_weight.dtype),
        grid=grid,
        in_specs=[
            pl.BlockSpec((t_blk, 1), lambda i, j: (i, 0)),        # labels
            pl.BlockSpec((v_blk_eff, D), lambda i, j: (j, 0)),    # table chunk
        ],
        out_specs=pl.BlockSpec((t_blk, D), lambda i, j: (i, 0)),
        scratch_shapes=[pltpu.VMEM((t_blk, D), jnp.float32)],
        compiler_params=pltpu.CompilerParams(
            dimension_semantics=("parallel", "arbitrary"),
            vmem_limit_bytes=vmem_limit),
        cost_estimate=cost,
    )(flat2d, table)

    return out[:n].reshape(*orig_shape, D)


if __name__ == "__main__":
    key = jax.random.PRNGKey(0)
    k_w, k_l, k_w2, k_l2 = jax.random.split(key, 4)

    # ---- shipped config: lm_output_units=32, d_model=128, labels (2, 8) ----
    V, D = 32, 128
    emb_weight = (0.02 * jax.random.normal(k_w, (V, D))).astype(jnp.float32)
    labels = jax.random.randint(k_l, (2, 8), 0, V, dtype=jnp.int32)

    ref = emb_weight[labels]

    # default wrapper (tiny N -> XLA-gather fast path)
    out_fast = jax.block_until_ready(text_ops_forward(labels, emb_weight))
    assert out_fast.shape == (2, 8, D)
    assert jnp.allclose(out_fast, ref, atol=1e-6), "fast-path mismatch"

    # force the Pallas kernel on the same tiny config (single grid step)
    out_pl = jax.block_until_ready(
        text_ops_forward(labels, emb_weight, force_pallas=True))
    assert jnp.allclose(out_pl, ref, atol=1e-6), "pallas small-config mismatch"

    # ---- larger config exercising token tiling + V-chunked accumulation ----
    V2, D2, N2 = 1024, 128, 2048          # grid = (4 token tiles, 2 vocab chunks)
    emb_weight2 = (0.02 * jax.random.normal(k_w2, (V2, D2))).astype(jnp.float32)
    labels2 = jax.random.randint(k_l2, (4, N2 // 4), 0, V2, dtype=jnp.int32)

    out2 = jax.block_until_ready(text_ops_forward(labels2, emb_weight2))
    ref2 = emb_weight2[labels2]
    assert out2.shape == (4, N2 // 4, D2)
    assert jnp.allclose(out2, ref2, atol=1e-6), "pallas large-config mismatch"

    print("KERNEL_OK")
</pallas_src>

<mosaic_0001>
module attributes {stable_mosaic.version = 11 : i64} {
  func.func @_embed_kernel(%arg0: i32, %arg1: i32, %arg2: memref<32x1xi32, #tpu.memory_space<vmem>>, %arg3: memref<32x128xf32, #tpu.memory_space<vmem>>, %arg4: memref<32x128xf32, #tpu.memory_space<vmem>>, %arg5: memref<32x128xf32, #tpu.memory_space<vmem>>) attributes {dimension_semantics = [#tpu.dimension_semantics<parallel>, #tpu.dimension_semantics<arbitrary>], iteration_bounds = array<i64: 1, 1>, scalar_prefetch = 0 : i64, scratch_operands = 1 : i64, tpu.core_type = #tpu.core_type<tc>, window_params = [{transform_indices = @transform_0, window_bounds = array<i64: 32, 1>}, {transform_indices = @transform_1, window_bounds = array<i64: 32, 128>}, {transform_indices = @transform_2, window_bounds = array<i64: 32, 128>}]} {
    %c0_i32 = arith.constant 0 : i32
    %0 = arith.cmpi eq, %arg1, %c0_i32 : i32
    %1 = arith.extui %0 : i1 to i32
    %c0_i32_0 = arith.constant 0 : i32
    %2 = arith.cmpi ne, %1, %c0_i32_0 : i32
    scf.if %2 {
      %cst_10 = arith.constant 0.000000e+00 : f32
      %20 = vector.broadcast %cst_10 : f32 to vector<32x128xf32>
      %c0_11 = arith.constant 0 : index
      %c0_12 = arith.constant 0 : index
      %21 = vector.load %arg5[%c0_11, %c0_12] : memref<32x128xf32, #tpu.memory_space<vmem>>, vector<32x128xf32>
      tpu.vector_store %arg5[%c0_11, %c0_12], %20 {strides = array<i32>} : memref<32x128xf32, #tpu.memory_space<vmem>>, vector<32x128xf32>,
    } else {
    }
    %c0 = arith.constant 0 : index
    %c0_1 = arith.constant 0 : index
    %3 = vector.load %arg2[%c0, %c0_1] : memref<32x1xi32, #tpu.memory_space<vmem>>, vector<32x1xi32>
    %4 = tpu.iota {dimensions = array<i32: 1>} : vector<32x32xi32>
    %c32_i32 = arith.constant 32 : i32
    %5 = arith.muli %arg1, %c32_i32 : i32
    %6 = vector.broadcast %5 : i32 to vector<32x32xi32>
    %7 = arith.addi %4, %6 : vector<32x32xi32>
    %8 = vector.broadcast %3 : vector<32x1xi32> to vector<32x32xi32>
    %9 = arith.cmpi eq, %7, %8 : vector<32x32xi32>
    %10 = arith.extui %9 : vector<32x32xi1> to vector<32x32xi32>
    %11 = arith.sitofp %10 : vector<32x32xi32> to vector<32x32xf32>
    %c0_2 = arith.constant 0 : index
    %c0_3 = arith.constant 0 : index
    %12 = vector.load %arg5[%c0_2, %c0_3] : memref<32x128xf32, #tpu.memory_space<vmem>>, vector<32x128xf32>
    %c0_4 = arith.constant 0 : index
    %c0_5 = arith.constant 0 : index
    %13 = vector.load %arg3[%c0_4, %c0_5] : memref<32x128xf32, #tpu.memory_space<vmem>>, vector<32x128xf32>
    %cst = arith.constant dense<0.000000e+00> : vector<32x128xf32>
    %14 = tpu.matmul %11, %13, %cst {dimension_numbers = #tpu.dot_dimension_numbers<[1], [0], [0], [1], [0, 0, 1, 1], [], []>, precision = #tpu.contract_precision<fp32>} : vector<32x32xf32>, vector<32x128xf32>, vector<32x128xf32> -> vector<32x128xf32>
    %15 = arith.addf %12, %14 : vector<32x128xf32>
    %c0_6 = arith.constant 0 : index
    %c0_7 = arith.constant 0 : index
    %16 = vector.load %arg5[%c0_6, %c0_7] : memref<32x128xf32, #tpu.memory_space<vmem>>, vector<32x128xf32>
    tpu.vector_store %arg5[%c0_6, %c0_7], %15 {strides = array<i32>} : memref<32x128xf32, #tpu.memory_space<vmem>>, vector<32x128xf32>,
    %c0_i32_8 = arith.constant 0 : i32
    %17 = arith.cmpi eq, %arg1, %c0_i32_8 : i32
    %18 = arith.extui %17 : i1 to i32
    %c0_i32_9 = arith.constant 0 : i32
    %19 = arith.cmpi ne, %18, %c0_i32_9 : i32
    scf.if %19 {
      %c0_10 = arith.constant 0 : index
      %c0_11 = arith.constant 0 : index
      %20 = vector.load %arg5[%c0_10, %c0_11] : memref<32x128xf32, #tpu.memory_space<vmem>>, vector<32x128xf32>
      %c0_12 = arith.constant 0 : index
      %c0_13 = arith.constant 0 : index
      %21 = vector.load %arg4[%c0_12, %c0_13] : memref<32x128xf32, #tpu.memory_space<vmem>>, vector<32x128xf32>
      tpu.vector_store %arg4[%c0_12, %c0_13], %20 {strides = array<i32>} : memref<32x128xf32, #tpu.memory_space<vmem>>, vector<32x128xf32>,
    } else {
    }
    return
  }
  func.func @transform_0(%arg0: i32, %arg1: i32) -> (i32, i32) {
    %c0_i32 = arith.constant 0 : i32
    %c0_i32_0 = arith.constant 0 : i32
    return %arg0, %c0_i32 : i32, i32
  }
  func.func @transform_1(%arg0: i32, %arg1: i32) -> (i32, i32) {
    %c0_i32 = arith.constant 0 : i32
    %c0_i32_0 = arith.constant 0 : i32
    return %arg1, %c0_i32 : i32, i32
  }
  func.func @transform_2(%arg0: i32, %arg1: i32) -> (i32, i32) {
    %c0_i32 = arith.constant 0 : i32
    %c0_i32_0 = arith.constant 0 : i32
    return %arg0, %c0_i32 : i32, i32
  }
}

</mosaic_0001>

<llo_original>
// kernel: tpu_custom_call.1
$region0: #{tpu_custom_call.1}
  #allocation0 [shape = 'u32[]', space=smem, size = 0x4, offset = 0x4, fixed_abs, tag = 'smem constant byte address 0x4 - core index']
  #allocation1 [shape = 'u32[72,128]{1,0:T(1,128)}', space=vmem, size = 0x9000, scoped, tag = 'internal scratch']
  #allocation2 [shape = 'f32[32,128]{1,0:T(8,128)}', space=vmem, size = 0x4000, scoped, tag = 'scratch operand']
  %s0 = inlined_call_operand.vmem [shape: s32[32,1], index: 0, kind: input, shape index: {}]
  %s1 = inlined_call_operand.vmem [shape: f32[32,128], index: 1, kind: input, shape index: {}]
  %s2 = inlined_call_operand.hbm [shape: f32[32,128], index: 2, kind: output, shape index: {}]
  %s3 = sld [smem:[#allocation0]]
  $region26: #{tpu_custom_call.1} parent=0
    _
  %s5 = ssub.s32 1, %s3
  %s6 = scalar_select 0, %s5, %s3
  $region1: #{tpu_custom_call.1} parent=0
    #allocation3 [shape = 'u8[16384]{0}', space=vmem, size = 0x4000, scoped, tag = 'output window, operand 0, single buffered']
    #allocation4 [shape = 's32[1]{0}', space=sflag, size = 0x4, scoped, tag = 'scoped memory for tpu_custom_call.1']
    %7 = vsyncpa [#allocation4], 0
    // Predicated region
    $region2: #{tpu_custom_call.1} parent=1 // pred_check
      _
    $region3: #{tpu_custom_call.1} parent=1 // pred_check_branch
      %9 = sbr.rel (0) target = $region5
    $region4: #{tpu_custom_call.1} parent=1 // pred_region
      _
    $region5: #{tpu_custom_call.1} parent=1 // pred_fallthru
      _
    // Predicated region
    $region6: #{tpu_custom_call.1} parent=1 // pred_check
      _
    $region7: #{tpu_custom_call.1} parent=1 // pred_check_branch
      %11 = sbr.rel (0) target = $region9
    $region8: #{tpu_custom_call.1} parent=1 // pred_region
      _
    $region9: #{tpu_custom_call.1} parent=1 // pred_fallthru
      _
    %p12 = scmp.eq.s32.totalorder 0, 0
    // Predicated region
    $region10: #{tpu_custom_call.1} parent=1 // pred_check
      %p13 = pneg %p12
    $region11: #{tpu_custom_call.1} parent=1 // pred_check_branch
      %15 = sbr.rel (%p13) target = $region13
    $region12: #{tpu_custom_call.1} parent=1 // pred_region
      %16 = vst [vmem:[#allocation2] sm:$0xff] 0.0
      %17 = vst [vmem:[#allocation2 + $0x8] sm:$0xff] 0.0
      %18 = vst [vmem:[#allocation2 + $0x10] sm:$0xff] 0.0
      %19 = vst [vmem:[#allocation2 + $0x18] sm:$0xff] 0.0
    $region13: #{tpu_custom_call.1} parent=1 // pred_fallthru
      _
    %v20 = vld [vmem:[%s0] sm:$0xff]
    %v21 = vld [vmem:[%s0 + $0x8] sm:$0xff]
    %v22 = vld [vmem:[%s0 + $0x10] sm:$0xff]
    %v23 = vld [vmem:[%s0 + $0x18] sm:$0xff]
    %v24 = vlaneseq
    %v25 = vand.u32 %v24, 127
    %s26 = smul.u32 0, 32
    %v27 = vstv %s26
    %v28 = vadd.s32 %v25, %v27
    %29 = vset.pattern.permute.xlu0 0
    %30 = vperm.xlu0 %29, %v20
    %v31 = vpop.permute.xlu0 %30
    %32 = vset.pattern.permute.xlu0 0
    %33 = vperm.xlu0 %32, %v21
    %v34 = vpop.permute.xlu0 %33
    %35 = vset.pattern.permute.xlu0 0
    %36 = vperm.xlu0 %35, %v22
    %v37 = vpop.permute.xlu0 %36
    %38 = vset.pattern.permute.xlu0 0
    %39 = vperm.xlu0 %38, %v23
    %v40 = vpop.permute.xlu0 %39
    %vm41 = vcmp.eq.s32.totalorder %v28, %v31
    %vm42 = vcmp.eq.s32.totalorder %v28, %v34
    %vm43 = vcmp.eq.s32.totalorder %v28, %v37
    %vm44 = vcmp.eq.s32.totalorder %v28, %v40
    %v45 = vsel %vm41, 1, 0
    %v46 = vsel %vm42, 1, 0
    %v47 = vsel %vm43, 1, 0
    %v48 = vsel %vm44, 1, 0
    %v49 = vcvt.s32.f32 %v45
    %v50 = vcvt.s32.f32 %v46
    %v51 = vcvt.s32.f32 %v47
    %v52 = vcvt.s32.f32 %v48
    %v53 = vld [vmem:[#allocation2] sm:$0xff]
    %v54 = vld [vmem:[#allocation2 + $0x8] sm:$0xff]
    %v55 = vld [vmem:[#allocation2 + $0x10] sm:$0xff]
    %v56 = vld [vmem:[#allocation2 + $0x18] sm:$0xff]
    %v57 = vld [vmem:[%s1] sm:$0xff]
    %v58 = vld [vmem:[%s1 + $0x8] sm:$0xff]
    %v59 = vld [vmem:[%s1 + $0x10] sm:$0xff]
    %v60 = vld [vmem:[%s1 + $0x18] sm:$0xff]
    %vm61 = vcmask 261120
    %v63 = vsel %vm61, %v49, 0
    %v66 = vsel %vm61, %v50, 0
    %v69 = vsel %vm61, %v51, 0
    %v72 = vsel %vm61, %v52, 0
    %74 = vmatpush.msra.mxu0 0.0
    %75 = vmatpush.msra.mxu0 0.0
    %76 = vmatpush.msra.mxu0 0.0
    %77 = vmatpush.msra.mxu0 0.0
    %78 = vmatpush.msra.mxu0 0.0
    %79 = vmatpush.msra.mxu0 0.0
    %80 = vmatpush.msra.mxu0 0.0
    %81 = vmatpush.msra.mxu0 0.0
    %82 = vmatpush.msra.mxu0 0.0
    %83 = vmatpush.msra.mxu0 0.0
    %84 = vmatpush.msra.mxu0 0.0
    %85 = vmatpush.msra.mxu0 0.0
    %v86 = vand.u32 %v60, 4294901760
    %87 = vmatpush.msra.mxu0 %v86
    %v88 = vand.u32 %v59, 4294901760
    %89 = vmatpush.msra.mxu0 %v88
    %v90 = vand.u32 %v58, 4294901760
    %91 = vmatpush.msra.mxu0 %v90
    %v92 = vand.u32 %v57, 4294901760
    %93 = vmatpush.msra.mxu0 %v92
    %v94 = vand.u32 %v63, 4294901760
    %v95 = vsub.f32 %v63, %v94
    %v96 = vand.u32 %v95, 4294901760
    %v97 = vsub.f32 %v95, %v96
    %v98 = vand.u32 %v97, 4294901760
    %99 = vmatmul.f32.gmra.mxu0 %v98
    %v100 = vpop.f32.mrf.mxu0
    %v101 = vadd.f32 0.0, %v100
    %v102 = vand.u32 %v66, 4294901760
    %v103 = vsub.f32 %v66, %v102
    %v104 = vand.u32 %v103, 4294901760
    %v105 = vsub.f32 %v103, %v104
    %v106 = vand.u32 %v105, 4294901760
    %107 = vmatmul.f32.gmra.mxu0 %v106
    %v108 = vpop.f32.mrf.mxu0
    %v109 = vadd.f32 0.0, %v108
    %v110 = vand.u32 %v69, 4294901760
    %v111 = vsub.f32 %v69, %v110
    %v112 = vand.u32 %v111, 4294901760
    %v113 = vsub.f32 %v111, %v112
    %v114 = vand.u32 %v113, 4294901760
    %115 = vmatmul.f32.gmra.mxu0 %v114
    %v116 = vpop.f32.mrf.mxu0
    %v117 = vadd.f32 0.0, %v116
    %v118 = vand.u32 %v72, 4294901760
    %v119 = vsub.f32 %v72, %v118
    %v120 = vand.u32 %v119, 4294901760
    %v121 = vsub.f32 %v119, %v120
    %v122 = vand.u32 %v121, 4294901760
    %123 = vmatmul.f32.gmra.mxu0 %v122
    %v124 = vpop.f32.mrf.mxu0
    %v125 = vadd.f32 0.0, %v124
    %126 = vdwg.mxu0
    %127 = vmatpush.msra.mxu0 0.0
    %128 = vmatpush.msra.mxu0 0.0
    %129 = vmatpush.msra.mxu0 0.0
    %130 = vmatpush.msra.mxu0 0.0
    %131 = vmatpush.msra.mxu0 0.0
    %132 = vmatpush.msra.mxu0 0.0
    %133 = vmatpush.msra.mxu0 0.0
    %134 = vmatpush.msra.mxu0 0.0
    %135 = vmatpush.msra.mxu0 0.0
    %136 = vmatpush.msra.mxu0 0.0
    %137 = vmatpush.msra.mxu0 0.0
    %138 = vmatpush.msra.mxu0 0.0
    %v139 = vand.u32 %v60, 4294901760
    %v140 = vsub.f32 %v60, %v139
    %v141 = vand.u32 %v140, 4294901760
    %v142 = vsub.f32 %v140, %v141
    %v143 = vand.u32 %v142, 4294901760
    %144 = vmatpush.msra.mxu0 %v143
    %v145 = vand.u32 %v59, 4294901760
    %v146 = vsub.f32 %v59, %v145
    %v147 = vand.u32 %v146, 4294901760
    %v148 = vsub.f32 %v146, %v147
    %v149 = vand.u32 %v148, 4294901760
    %150 = vmatpush.msra.mxu0 %v149
    %v151 = vand.u32 %v58, 4294901760
    %v152 = vsub.f32 %v58, %v151
    %v153 = vand.u32 %v152, 4294901760
    %v154 = vsub.f32 %v152, %v153
    %v155 = vand.u32 %v154, 4294901760
    %156 = vmatpush.msra.mxu0 %v155
    %v157 = vand.u32 %v57, 4294901760
    %v158 = vsub.f32 %v57, %v157
    %v159 = vand.u32 %v158, 4294901760
    %v160 = vsub.f32 %v158, %v159
    %v161 = vand.u32 %v160, 4294901760
    %162 = vmatpush.msra.mxu0 %v161
    %v163 = vand.u32 %v63, 4294901760
    %164 = vmatmul.f32.gmra.mxu0 %v163
    %v165 = vpop.f32.mrf.mxu0
    %v166 = vadd.f32 %v101, %v165
    %v167 = vand.u32 %v66, 4294901760
    %168 = vmatmul.f32.gmra.mxu0 %v167
    %v169 = vpop.f32.mrf.mxu0
    %v170 = vadd.f32 %v109, %v169
    %v171 = vand.u32 %v69, 4294901760
    %172 = vmatmul.f32.gmra.mxu0 %v171
    %v173 = vpop.f32.mrf.mxu0
    %v174 = vadd.f32 %v117, %v173
    %v175 = vand.u32 %v72, 4294901760
    %176 = vmatmul.f32.gmra.mxu0 %v175
    %v177 = vpop.f32.mrf.mxu0
    %v178 = vadd.f32 %v125, %v177
    %179 = vdwg.mxu0
    %180 = vmatpush.msra.mxu0 0.0
    %181 = vmatpush.msra.mxu0 0.0
    %182 = vmatpush.msra.mxu0 0.0
    %183 = vmatpush.msra.mxu0 0.0
    %184 = vmatpush.msra.mxu0 0.0
    %185 = vmatpush.msra.mxu0 0.0
    %186 = vmatpush.msra.mxu0 0.0
    %187 = vmatpush.msra.mxu0 0.0
    %188 = vmatpush.msra.mxu0 0.0
    %189 = vmatpush.msra.mxu0 0.0
    %190 = vmatpush.msra.mxu0 0.0
    %191 = vmatpush.msra.mxu0 0.0
    %v192 = vand.u32 %v60, 4294901760
    %v193 = vsub.f32 %v60, %v192
    %194 = vmatpush.msra.mxu0 %v193
    %v195 = vand.u32 %v59, 4294901760
    %v196 = vsub.f32 %v59, %v195
    %197 = vmatpush.msra.mxu0 %v196
    %v198 = vand.u32 %v58, 4294901760
    %v199 = vsub.f32 %v58, %v198
    %200 = vmatpush.msra.mxu0 %v199
    %v201 = vand.u32 %v57, 4294901760
    %v202 = vsub.f32 %v57, %v201
    %203 = vmatpush.msra.mxu0 %v202
    %v204 = vand.u32 %v63, 4294901760
    %v205 = vsub.f32 %v63, %v204
    %206 = vmatmul.f32.gmra.mxu0 %v205
    %v207 = vpop.f32.mrf.mxu0
    %v208 = vadd.f32 %v166, %v207
    %v209 = vand.u32 %v66, 4294901760
    %v210 = vsub.f32 %v66, %v209
    %211 = vmatmul.f32.gmra.mxu0 %v210
    %v212 = vpop.f32.mrf.mxu0
    %v213 = vadd.f32 %v170, %v212
    %v214 = vand.u32 %v69, 4294901760
    %v215 = vsub.f32 %v69, %v214
    %216 = vmatmul.f32.gmra.mxu0 %v215
    %v217 = vpop.f32.mrf.mxu0
    %v218 = vadd.f32 %v174, %v217
    %v219 = vand.u32 %v72, 4294901760
    %v220 = vsub.f32 %v72, %v219
    %221 = vmatmul.f32.gmra.mxu0 %v220
    %v222 = vpop.f32.mrf.mxu0
    %v223 = vadd.f32 %v178, %v222
    %224 = vdwg.mxu0
    %225 = vmatpush.msra.mxu0 0.0
    %226 = vmatpush.msra.mxu0 0.0
    %227 = vmatpush.msra.mxu0 0.0
    %228 = vmatpush.msra.mxu0 0.0
    %229 = vmatpush.msra.mxu0 0.0
    %230 = vmatpush.msra.mxu0 0.0
    %231 = vmatpush.msra.mxu0 0.0
    %232 = vmatpush.msra.mxu0 0.0
    %233 = vmatpush.msra.mxu0 0.0
    %234 = vmatpush.msra.mxu0 0.0
    %235 = vmatpush.msra.mxu0 0.0
    %236 = vmatpush.msra.mxu0 0.0
    %v237 = vand.u32 %v60, 4294901760
    %238 = vmatpush.msra.mxu0 %v237
    %v239 = vand.u32 %v59, 4294901760
    %240 = vmatpush.msra.mxu0 %v239
    %v241 = vand.u32 %v58, 4294901760
    %242 = vmatpush.msra.mxu0 %v241
    %v243 = vand.u32 %v57, 4294901760
    %244 = vmatpush.msra.mxu0 %v243
    %v245 = vand.u32 %v63, 4294901760
    %v246 = vsub.f32 %v63, %v245
    %v247 = vand.u32 %v246, 4294901760
    %248 = vmatmul.f32.gmra.mxu0 %v247
    %v249 = vpop.f32.mrf.mxu0
    %v250 = vadd.f32 %v208, %v249
    %v251 = vand.u32 %v66, 4294901760
    %v252 = vsub.f32 %v66, %v251
    %v253 = vand.u32 %v252, 4294901760
    %254 = vmatmul.f32.gmra.mxu0 %v253
    %v255 = vpop.f32.mrf.mxu0
    %v256 = vadd.f32 %v213, %v255
    %v257 = vand.u32 %v69, 4294901760
    %v258 = vsub.f32 %v69, %v257
    %v259 = vand.u32 %v258, 4294901760
    %260 = vmatmul.f32.gmra.mxu0 %v259
    %v261 = vpop.f32.mrf.mxu0
    %v262 = vadd.f32 %v218, %v261
    %v263 = vand.u32 %v72, 4294901760
    %v264 = vsub.f32 %v72, %v263
    %v265 = vand.u32 %v264, 4294901760
    %266 = vmatmul.f32.gmra.mxu0 %v265
    %v267 = vpop.f32.mrf.mxu0
    %v268 = vadd.f32 %v223, %v267
    %269 = vdwg.mxu0
    %270 = vmatpush.msra.mxu0 0.0
    %271 = vmatpush.msra.mxu0 0.0
    %272 = vmatpush.msra.mxu0 0.0
    %273 = vmatpush.msra.mxu0 0.0
    %274 = vmatpush.msra.mxu0 0.0
    %275 = vmatpush.msra.mxu0 0.0
    %276 = vmatpush.msra.mxu0 0.0
    %277 = vmatpush.msra.mxu0 0.0
    %278 = vmatpush.msra.mxu0 0.0
    %279 = vmatpush.msra.mxu0 0.0
    %280 = vmatpush.msra.mxu0 0.0
    %281 = vmatpush.msra.mxu0 0.0
    %v282 = vand.u32 %v60, 4294901760
    %v283 = vsub.f32 %v60, %v282
    %v284 = vand.u32 %v283, 4294901760
    %285 = vmatpush.msra.mxu0 %v284
    %v286 = vand.u32 %v59, 4294901760
    %v287 = vsub.f32 %v59, %v286
    %v288 = vand.u32 %v287, 4294901760
    %289 = vmatpush.msra.mxu0 %v288
    %v290 = vand.u32 %v58, 4294901760
    %v291 = vsub.f32 %v58, %v290
    %v292 = vand.u32 %v291, 4294901760
    %293 = vmatpush.msra.mxu0 %v292
    %v294 = vand.u32 %v57, 4294901760
    %v295 = vsub.f32 %v57, %v294
    %v296 = vand.u32 %v295, 4294901760
    %297 = vmatpush.msra.mxu0 %v296
    %v298 = vand.u32 %v63, 4294901760
    %299 = vmatmul.f32.gmra.mxu0 %v298
    %v300 = vpop.f32.mrf.mxu0
    %v301 = vadd.f32 %v250, %v300
    %v302 = vand.u32 %v66, 4294901760
    %303 = vmatmul.f32.gmra.mxu0 %v302
    %v304 = vpop.f32.mrf.mxu0
    %v305 = vadd.f32 %v256, %v304
    %v306 = vand.u32 %v69, 4294901760
    %307 = vmatmul.f32.gmra.mxu0 %v306
    %v308 = vpop.f32.mrf.mxu0
    %v309 = vadd.f32 %v262, %v308
    %v310 = vand.u32 %v72, 4294901760
    %311 = vmatmul.f32.gmra.mxu0 %v310
    %v312 = vpop.f32.mrf.mxu0
    %v313 = vadd.f32 %v268, %v312
    %314 = vdwg.mxu0
    %315 = vmatpush.msra.mxu0 0.0
    %316 = vmatpush.msra.mxu0 0.0
    %317 = vmatpush.msra.mxu0 0.0
    %318 = vmatpush.msra.mxu0 0.0
    %319 = vmatpush.msra.mxu0 0.0
    %320 = vmatpush.msra.mxu0 0.0
    %321 = vmatpush.msra.mxu0 0.0
    %322 = vmatpush.msra.mxu0 0.0
    %323 = vmatpush.msra.mxu0 0.0
    %324 = vmatpush.msra.mxu0 0.0
    %325 = vmatpush.msra.mxu0 0.0
    %326 = vmatpush.msra.mxu0 0.0
    %v327 = vand.u32 %v60, 4294901760
    %328 = vmatpush.msra.mxu0 %v327
    %v329 = vand.u32 %v59, 4294901760
    %330 = vmatpush.msra.mxu0 %v329
    %v331 = vand.u32 %v58, 4294901760
    %332 = vmatpush.msra.mxu0 %v331
    %v333 = vand.u32 %v57, 4294901760
    %334 = vmatpush.msra.mxu0 %v333
    %v335 = vand.u32 %v63, 4294901760
    %336 = vmatmul.f32.gmra.mxu0 %v335
    %v337 = vpop.f32.mrf.mxu0
    %v338 = vadd.f32 %v301, %v337
    %v339 = vand.u32 %v66, 4294901760
    %340 = vmatmul.f32.gmra.mxu0 %v339
    %v341 = vpop.f32.mrf.mxu0
    %v342 = vadd.f32 %v305, %v341
    %v343 = vand.u32 %v69, 4294901760
    %344 = vmatmul.f32.gmra.mxu0 %v343
    %v345 = vpop.f32.mrf.mxu0
    %v346 = vadd.f32 %v309, %v345
    %v347 = vand.u32 %v72, 4294901760
    %348 = vmatmul.f32.gmra.mxu0 %v347
    %v349 = vpop.f32.mrf.mxu0
    %v350 = vadd.f32 %v313, %v349
    %351 = vdwg.mxu0
    %v352 = vadd.f32 %v53, %v338
    %v353 = vadd.f32 %v54, %v342
    %v354 = vadd.f32 %v55, %v346
    %v355 = vadd.f32 %v56, %v350
    %356 = vst [vmem:[#allocation2] sm:$0xff] %v352
    %357 = vst [vmem:[#allocation2 + $0x8] sm:$0xff] %v353
    %358 = vst [vmem:[#allocation2 + $0x10] sm:$0xff] %v354
    %359 = vst [vmem:[#allocation2 + $0x18] sm:$0xff] %v355
    // Predicated region
    $region14: #{tpu_custom_call.1} parent=1 // pred_check
      %p360 = pneg %p12
    $region15: #{tpu_custom_call.1} parent=1 // pred_check_branch
      %362 = sbr.rel (%p360) target = $region17
    $region16: #{tpu_custom_call.1} parent=1 // pred_region
      %v363 = vld [vmem:[#allocation2] sm:$0xff]
      %v364 = vld [vmem:[#allocation2 + $0x8] sm:$0xff]
      %v365 = vld [vmem:[#allocation2 + $0x10] sm:$0xff]
      %v366 = vld [vmem:[#allocation2 + $0x18] sm:$0xff]
      %367 = vst [vmem:[#allocation3] sm:$0xff] %v363
      %368 = vst [vmem:[#allocation3 + $0x8] sm:$0xff] %v364
      %369 = vst [vmem:[#allocation3 + $0x10] sm:$0xff] %v365
      %370 = vst [vmem:[#allocation3 + $0x18] sm:$0xff] %v366
    $region17: #{tpu_custom_call.1} parent=1 // pred_fallthru
      _
    // Predicated region
    $region18: #{tpu_custom_call.1} parent=1 // pred_check
      _
    $region19: #{tpu_custom_call.1} parent=1 // pred_check_branch
      %372 = sbr.rel (0) target = $region21
    $region20: #{tpu_custom_call.1} parent=1 // pred_region
      %374 = vsyncadd [#allocation4], 0
      %s375 = sshll.u32 [#allocation3], 4
      %s376 = int_to_ptr.vmem [resolvable:$true] %s375
      %s377 = sshll.u32 %s2, 4
      %s378 = int_to_ptr.hbm [resolvable:$true] %s377
      %383 = dma.vmem_to_hbm [thread:$0]  %s376, 512, %s378, [#allocation4], 128, 128, 8
    $region21: #{tpu_custom_call.1} parent=1 // pred_fallthru
      _
    // Predicated region
    $region22: #{tpu_custom_call.1} parent=1 // pred_check
      _
    $region23: #{tpu_custom_call.1} parent=1 // pred_check_branch
      %385 = sbr.rel (0) target = $region25
    $region24: #{tpu_custom_call.1} parent=1 // pred_region
      %387 = dma.done [#allocation4], 512
    $region25: #{tpu_custom_call.1} parent=1 // pred_fallthru
      _
    %388 = vsyncpa [#allocation4], 1

</llo_original>
